<compile_context>
chip_gen: v5e
topology: v5e:2x2
jax: 0.10.0
libtpu: 0.0.40
codegen_flags: <defaults>
</compile_context>

<pallas_src>
import functools

import jax
import jax.numpy as jnp
from jax.experimental import pallas as pl
from jax.experimental.pallas import tpu as pltpu


def _per_row_focal_loss(x, labels, alpha, gamma):
    """x: [TB, C] f32 logits tile, labels: [TB, 1] i32, alpha: [1, C] f32.

    Returns per-row focal loss, shape [TB, 1] (f32).
    """
    tb, c = x.shape

    # Numerically stable log-softmax pieces.  Note: no full [TB, C]
    # exp(log_p) pass -- p_t is recovered as exp(log_p_t) after the reduce.
    m = jnp.max(x, axis=1, keepdims=True)                             # [TB, 1]
    shifted = x - m                                                   # [TB, C]
    lse = jnp.log(jnp.sum(jnp.exp(shifted), axis=1, keepdims=True))   # [TB, 1]

    # one-hot(labels) via iota/compare; two lane reductions total.
    class_ids = jax.lax.broadcasted_iota(jnp.int32, (tb, c), 1)
    one_hot = (class_ids == labels).astype(jnp.float32)               # [TB, C]
    shifted_t = jnp.sum(shifted * one_hot, axis=1, keepdims=True)     # [TB, 1]
    alpha_t = jnp.sum(alpha * one_hot, axis=1, keepdims=True)         # [TB, 1]

    log_p_t = shifted_t - lse                                         # [TB, 1]
    p_t = jnp.exp(log_p_t)                                            # B-sized exp only
    one_minus_pt = 1.0 - p_t

    g = float(gamma)
    if g == 0.0:
        w = jnp.ones_like(one_minus_pt)
    elif g.is_integer() and 1.0 <= g <= 8.0:
        # Integer gamma: repeated multiply (cheaper than pow, no log(0) edge).
        w = one_minus_pt
        for _ in range(int(g) - 1):
            w = w * one_minus_pt
    else:
        w = one_minus_pt ** g

    return -alpha_t * w * log_p_t                                     # [TB, 1]


def _focal_reduce_kernel(logits_ref, labels_ref, alpha_ref, out_ref, acc_ref,
                         *, gamma, total_rows, tiles_per_core, tile_rows):
    c = pl.program_id(0)
    t = pl.program_id(1)

    @pl.when(t == 0)
    def _():
        acc_ref[...] = jnp.zeros_like(acc_ref)

    loss = _per_row_focal_loss(
        logits_ref[...].astype(jnp.float32),
        labels_ref[...],
        alpha_ref[...].astype(jnp.float32),
        gamma)                                                        # [TB, 1]

    # Mask rows past the true batch size (partial last tile).  jnp.where is an
    # elementwise select, so garbage in the padded rows never propagates.
    tile_idx = c * tiles_per_core + t
    row_ids = tile_idx * tile_rows + jax.lax.broadcasted_iota(
        jnp.int32, loss.shape, 0)
    loss = jnp.where(row_ids < total_rows, loss, 0.0)

    acc_ref[...] += jnp.sum(loss, axis=0, keepdims=True)              # [1, 1]

    @pl.when(t == pl.num_programs(1) - 1)
    def _():
        out_ref[...] = acc_ref[...].reshape(1, 1, 1)


def _focal_none_kernel(logits_ref, labels_ref, alpha_ref, out_ref, *, gamma):
    out_ref[...] = _per_row_focal_loss(
        logits_ref[...].astype(jnp.float32),
        labels_ref[...],
        alpha_ref[...].astype(jnp.float32),
        gamma)


def _pick_tile_rows(num_classes, itemsize):
    # ~16 MiB budget for the double-buffered logits tiles -> fits the default
    # scoped-VMEM limit on v5e/v6e and the smaller 64 MiB VMEM on v7x.
    budget = 16 * 1024 * 1024
    tb = budget // (2 * max(num_classes, 1) * max(itemsize, 1))
    tb = int(max(8, min(2048, tb)))
    tb -= tb % 8
    return max(tb, 8)


def focal_loss(logits, labels, alpha=None, gamma=2.0, reduction="mean",
               tile_rows=None):
    """Pallas focal loss.

    logits: [B, C] float (f32 or bf16), labels: [B] int.
    reduction: 'mean' | 'sum' -> scalar; 'none' -> [B] per-row loss.
    """
    B, C = logits.shape
    itemsize = jnp.dtype(logits.dtype).itemsize

    if alpha is None:
        alpha_vec = jnp.ones((1, C), jnp.float32)
    else:
        alpha_vec = jnp.broadcast_to(
            jnp.asarray(alpha, jnp.float32), (C,)).reshape(1, C)
    labels2d = labels.astype(jnp.int32).reshape(B, 1)

    TB = int(tile_rows) if tile_rows is not None else _pick_tile_rows(C, itemsize)
    TB = min(TB, B)
    if TB < B:
        TB = max(8, (TB // 8) * 8)        # sublane-aligned when tiling the batch
    num_tiles = -(-B // TB)

    cost = pl.CostEstimate(
        flops=10 * B * C,
        transcendentals=B * C + 4 * B,
        bytes_accessed=B * C * itemsize + B * 4 + C * 4 + 4 * num_tiles)

    if reduction in ("mean", "sum"):
        # Two independent partial sums when the tile count splits evenly, so a
        # megacore chip (v7x) can shard the leading "parallel" axis; on a
        # single-TC chip the extra axis simply iterates.
        ncores = 2 if (num_tiles >= 2 and num_tiles % 2 == 0) else 1
        tpc = num_tiles // ncores

        kernel = functools.partial(
            _focal_reduce_kernel, gamma=float(gamma), total_rows=B,
            tiles_per_core=tpc, tile_rows=TB)

        partials = pl.pallas_call(
            kernel,
            out_shape=jax.ShapeDtypeStruct((ncores, 1, 1), jnp.float32),
            grid=(ncores, tpc),
            in_specs=[
                pl.BlockSpec((TB, C), lambda c, t: (c * tpc + t, 0)),  # logits
                pl.BlockSpec((TB, 1), lambda c, t: (c * tpc + t, 0)),  # labels
                pl.BlockSpec((1, C), lambda c, t: (0, 0)),             # alpha
            ],
            out_specs=pl.BlockSpec((1, 1, 1), lambda c, t: (c, 0, 0)),
            scratch_shapes=[pltpu.VMEM((1, 1), jnp.float32)],
            compiler_params=pltpu.CompilerParams(
                dimension_semantics=("parallel", "arbitrary")),
            cost_estimate=cost,
        )(logits, labels2d, alpha_vec)

        total = jnp.sum(partials)
        if reduction == "mean":
            return total / float(B)
        return total

    elif reduction == "none":
        kernel = functools.partial(_focal_none_kernel, gamma=float(gamma))
        out = pl.pallas_call(
            kernel,
            out_shape=jax.ShapeDtypeStruct((B, 1), jnp.float32),
            grid=(num_tiles,),
            in_specs=[
                pl.BlockSpec((TB, C), lambda i: (i, 0)),
                pl.BlockSpec((TB, 1), lambda i: (i, 0)),
                pl.BlockSpec((1, C), lambda i: (0, 0)),
            ],
            out_specs=pl.BlockSpec((TB, 1), lambda i: (i, 0)),
            compiler_params=pltpu.CompilerParams(
                dimension_semantics=("parallel",)),
            cost_estimate=cost,
        )(logits, labels2d, alpha_vec)
        return out.reshape(B)

    else:
        raise ValueError(f"Unsupported reduction: {reduction!r}")


def _focal_loss_ref(logits, labels, alpha=None, gamma=2.0, reduction="mean"):
    """Pure-JAX reference matching the PyTorch module."""
    B, C = logits.shape
    log_p = jax.nn.log_softmax(logits.astype(jnp.float32), axis=1)
    p = jnp.exp(log_p)
    one_hot = jax.nn.one_hot(labels, C, dtype=jnp.float32)
    p_t = jnp.sum(p * one_hot, axis=1)
    log_p_t = jnp.sum(log_p * one_hot, axis=1)
    a = jnp.ones((C,), jnp.float32) if alpha is None else jnp.broadcast_to(
        jnp.asarray(alpha, jnp.float32), (C,))
    alpha_t = jnp.sum(a * one_hot, axis=1)
    loss = -alpha_t * (1.0 - p_t) ** gamma * log_p_t
    if reduction == "mean":
        return jnp.mean(loss)
    if reduction == "sum":
        return jnp.sum(loss)
    return loss


if __name__ == "__main__":
    key = jax.random.PRNGKey(0)
    k1, k2, k3, k4 = jax.random.split(key, 4)

    # Small shapes consistent with the module: logits [batch, num_classes].
    B, C = 8, 32
    logits = jax.random.normal(k1, (B, C), dtype=jnp.float32)
    labels = jax.random.randint(k2, (B,), 0, C, dtype=jnp.int32)

    # 1) default: mean reduction, alpha=None, gamma=2
    out = jax.block_until_ready(focal_loss(logits, labels))
    ref = _focal_loss_ref(logits, labels)
    assert jnp.allclose(out, ref, atol=1e-4, rtol=1e-4), (out, ref)

    # 2) sum reduction with per-class alpha and gamma=3
    alpha = jnp.linspace(0.5, 1.5, C)
    out2 = jax.block_until_ready(
        focal_loss(logits, labels, alpha=alpha, gamma=3.0, reduction="sum"))
    ref2 = _focal_loss_ref(logits, labels, alpha=alpha, gamma=3.0, reduction="sum")
    assert jnp.allclose(out2, ref2, atol=1e-4, rtol=1e-4), (out2, ref2)

    # 3) reduction='none'
    out3 = jax.block_until_ready(focal_loss(logits, labels, reduction="none"))
    ref3 = _focal_loss_ref(logits, labels, reduction="none")
    assert jnp.allclose(out3, ref3, atol=1e-4, rtol=1e-4), (out3, ref3)

    # 4) multi-tile batch grid + partial-tile masking (B not a tile multiple)
    B2 = 20
    logits2 = jax.random.normal(k3, (B2, C), dtype=jnp.float32)
    labels2 = jax.random.randint(k4, (B2,), 0, C, dtype=jnp.int32)
    out4 = jax.block_until_ready(focal_loss(logits2, labels2, tile_rows=8))
    ref4 = _focal_loss_ref(logits2, labels2)
    assert jnp.allclose(out4, ref4, atol=1e-4, rtol=1e-4), (out4, ref4)

    # 5) even tile count -> 2 partial-sum "cores" (megacore path on v7x)
    B3 = 32
    logits3 = jax.random.normal(k3, (B3, C), dtype=jnp.float32)
    labels3 = jax.random.randint(k4, (B3,), 0, C, dtype=jnp.int32)
    out5 = jax.block_until_ready(
        focal_loss(logits3, labels3, reduction="sum", tile_rows=8))
    ref5 = _focal_loss_ref(logits3, labels3, reduction="sum")
    assert jnp.allclose(out5, ref5, atol=1e-4, rtol=1e-4), (out5, ref5)

    print("KERNEL_OK")
</pallas_src>

<mosaic_0001>
module attributes {stable_mosaic.version = 11 : i64} {
  func.func @_focal_reduce_kernel(%arg0: i32, %arg1: i32, %arg2: memref<8x32xf32, #tpu.memory_space<vmem>>, %arg3: memref<8x1xi32, #tpu.memory_space<vmem>>, %arg4: memref<1x32xf32, #tpu.memory_space<vmem>>, %arg5: memref<1x1x1xf32, #tpu.memory_space<vmem>>, %arg6: memref<1x1xf32, #tpu.memory_space<vmem>>) attributes {dimension_semantics = [#tpu.dimension_semantics<parallel>, #tpu.dimension_semantics<arbitrary>], iteration_bounds = array<i64: 1, 1>, scalar_prefetch = 0 : i64, scratch_operands = 1 : i64, tpu.core_type = #tpu.core_type<tc>, window_params = [{transform_indices = @transform_0, window_bounds = array<i64: 8, 32>}, {transform_indices = @transform_1, window_bounds = array<i64: 8, 1>}, {pipeline_mode = #tpu.pipeline_mode<synchronous>, transform_indices = @transform_2, window_bounds = array<i64: 1, 32>}, {transform_indices = @transform_3, window_bounds = array<i64: 1, 1, 1>}]} {
    %c0_i32 = arith.constant 0 : i32
    %0 = arith.cmpi eq, %arg1, %c0_i32 : i32
    %1 = arith.extui %0 : i1 to i32
    %c0_i32_0 = arith.constant 0 : i32
    %2 = arith.cmpi ne, %1, %c0_i32_0 : i32
    scf.if %2 {
      %cst_20 = arith.constant 0.000000e+00 : f32
      %53 = vector.broadcast %cst_20 : f32 to vector<1x1xf32>
      %c0_21 = arith.constant 0 : index
      %c0_22 = arith.constant 0 : index
      %54 = vector.load %arg6[%c0_21, %c0_22] : memref<1x1xf32, #tpu.memory_space<vmem>>, vector<1x1xf32>
      tpu.vector_store %arg6[%c0_21, %c0_22], %53 {strides = array<i32>} : memref<1x1xf32, #tpu.memory_space<vmem>>, vector<1x1xf32>,
    } else {
    }
    %c0 = arith.constant 0 : index
    %c0_1 = arith.constant 0 : index
    %3 = vector.load %arg2[%c0, %c0_1] : memref<8x32xf32, #tpu.memory_space<vmem>>, vector<8x32xf32>
    %c0_2 = arith.constant 0 : index
    %c0_3 = arith.constant 0 : index
    %4 = vector.load %arg3[%c0_2, %c0_3] : memref<8x1xi32, #tpu.memory_space<vmem>>, vector<8x1xi32>
    %c0_4 = arith.constant 0 : index
    %c0_5 = arith.constant 0 : index
    %5 = vector.load %arg4[%c0_4, %c0_5] : memref<1x32xf32, #tpu.memory_space<vmem>>, vector<1x32xf32>
    %cst = arith.constant dense<0xFF800000> : vector<8xf32>
    %6 = vector.multi_reduction <maximumf>, %3, %cst [1] : vector<8x32xf32> to vector<8xf32>
    %7 = vector.shape_cast %6 : vector<8xf32> to vector<8x1xf32>
    %8 = vector.broadcast %7 : vector<8x1xf32> to vector<8x32xf32>
    %9 = arith.subf %3, %8 : vector<8x32xf32>
    %10 = math.exp %9 : vector<8x32xf32>
    %cst_6 = arith.constant dense<0.000000e+00> : vector<8xf32>
    %11 = vector.multi_reduction <add>, %10, %cst_6 [1] : vector<8x32xf32> to vector<8xf32>
    %12 = vector.shape_cast %11 : vector<8xf32> to vector<8x1xf32>
    %13 = math.log %12 : vector<8x1xf32>
    %14 = tpu.iota {dimensions = array<i32: 1>} : vector<8x32xi32>
    %15 = vector.broadcast %4 : vector<8x1xi32> to vector<8x32xi32>
    %16 = arith.cmpi eq, %14, %15 : vector<8x32xi32>
    %17 = arith.extui %16 : vector<8x32xi1> to vector<8x32xi32>
    %18 = arith.sitofp %17 : vector<8x32xi32> to vector<8x32xf32>
    %19 = arith.mulf %9, %18 : vector<8x32xf32>
    %cst_7 = arith.constant dense<0.000000e+00> : vector<8xf32>
    %20 = vector.multi_reduction <add>, %19, %cst_7 [1] : vector<8x32xf32> to vector<8xf32>
    %21 = vector.shape_cast %20 : vector<8xf32> to vector<8x1xf32>
    %22 = vector.broadcast %5 : vector<1x32xf32> to vector<8x32xf32>
    %23 = arith.mulf %22, %18 : vector<8x32xf32>
    %cst_8 = arith.constant dense<0.000000e+00> : vector<8xf32>
    %24 = vector.multi_reduction <add>, %23, %cst_8 [1] : vector<8x32xf32> to vector<8xf32>
    %25 = vector.shape_cast %24 : vector<8xf32> to vector<8x1xf32>
    %26 = arith.subf %21, %13 : vector<8x1xf32>
    %27 = math.exp %26 : vector<8x1xf32>
    %cst_9 = arith.constant 1.000000e+00 : f32
    %28 = vector.broadcast %cst_9 : f32 to vector<8x1xf32>
    %29 = arith.subf %28, %27 : vector<8x1xf32>
    %30 = arith.mulf %29, %29 : vector<8x1xf32>
    %cst_10 = arith.constant 0.000000e+00 : f32
    %31 = vector.broadcast %cst_10 : f32 to vector<8x1xf32>
    %32 = arith.subf %31, %25 : vector<8x1xf32>
    %33 = arith.mulf %32, %30 : vector<8x1xf32>
    %34 = arith.mulf %33, %26 : vector<8x1xf32>
    %c1_i32 = arith.constant 1 : i32
    %35 = arith.muli %arg0, %c1_i32 : i32
    %36 = arith.addi %35, %arg1 : i32
    %c8_i32 = arith.constant 8 : i32
    %37 = arith.muli %36, %c8_i32 : i32
    %38 = tpu.iota {dimensions = array<i32: 0>} : vector<8x1xi32>
    %39 = vector.broadcast %37 : i32 to vector<8x1xi32>
    %40 = arith.addi %39, %38 : vector<8x1xi32>
    %c8_i32_11 = arith.constant 8 : i32
    %41 = vector.broadcast %c8_i32_11 : i32 to vector<8x1xi32>
    %42 = arith.cmpi slt, %40, %41 : vector<8x1xi32>
    %cst_12 = arith.constant 0.000000e+00 : f32
    %43 = vector.broadcast %cst_12 : f32 to vector<8x1xf32>
    %44 = arith.select %42, %34, %43 : vector<8x1xi1>, vector<8x1xf32>
    %c0_13 = arith.constant 0 : index
    %c0_14 = arith.constant 0 : index
    %45 = vector.load %arg6[%c0_13, %c0_14] : memref<1x1xf32, #tpu.memory_space<vmem>>, vector<1x1xf32>
    %cst_15 = arith.constant dense<0.000000e+00> : vector<1xf32>
    %46 = vector.multi_reduction <add>, %44, %cst_15 [0] : vector<8x1xf32> to vector<1xf32>
    %47 = vector.shape_cast %46 : vector<1xf32> to vector<1x1xf32>
    %48 = arith.addf %45, %47 : vector<1x1xf32>
    %c0_16 = arith.constant 0 : index
    %c0_17 = arith.constant 0 : index
    %49 = vector.load %arg6[%c0_16, %c0_17] : memref<1x1xf32, #tpu.memory_space<vmem>>, vector<1x1xf32>
    tpu.vector_store %arg6[%c0_16, %c0_17], %48 {strides = array<i32>} : memref<1x1xf32, #tpu.memory_space<vmem>>, vector<1x1xf32>,
    %c0_i32_18 = arith.constant 0 : i32
    %50 = arith.cmpi eq, %arg1, %c0_i32_18 : i32
    %51 = arith.extui %50 : i1 to i32
    %c0_i32_19 = arith.constant 0 : i32
    %52 = arith.cmpi ne, %51, %c0_i32_19 : i32
    scf.if %52 {
      %c0_20 = arith.constant 0 : index
      %c0_21 = arith.constant 0 : index
      %53 = vector.load %arg6[%c0_20, %c0_21] : memref<1x1xf32, #tpu.memory_space<vmem>>, vector<1x1xf32>
      %54 = vector.shape_cast %53 : vector<1x1xf32> to vector<1x1x1xf32>
      %c0_22 = arith.constant 0 : index
      %c0_23 = arith.constant 0 : index
      %c0_24 = arith.constant 0 : index
      %55 = vector.load %arg5[%c0_22, %c0_23, %c0_24] : memref<1x1x1xf32, #tpu.memory_space<vmem>>, vector<1x1x1xf32>
      tpu.vector_store %arg5[%c0_22, %c0_23, %c0_24], %54 {strides = array<i32>} : memref<1x1x1xf32, #tpu.memory_space<vmem>>, vector<1x1x1xf32>,
    } else {
    }
    return
  }
  func.func @transform_0(%arg0: i32, %arg1: i32) -> (i32, i32) {
    %c1_i32 = arith.constant 1 : i32
    %0 = arith.muli %arg0, %c1_i32 : i32
    %1 = arith.addi %0, %arg1 : i32
    %c0_i32 = arith.constant 0 : i32
    %c0_i32_0 = arith.constant 0 : i32
    return %1, %c0_i32 : i32, i32
  }
  func.func @transform_1(%arg0: i32, %arg1: i32) -> (i32, i32) {
    %c1_i32 = arith.constant 1 : i32
    %0 = arith.muli %arg0, %c1_i32 : i32
    %1 = arith.addi %0, %arg1 : i32
    %c0_i32 = arith.constant 0 : i32
    %c0_i32_0 = arith.constant 0 : i32
    return %1, %c0_i32 : i32, i32
  }
  func.func @transform_2(%arg0: i32, %arg1: i32) -> (i32, i32) {
    %c0_i32 = arith.constant 0 : i32
    %c0_i32_0 = arith.constant 0 : i32
    %c0_i32_1 = arith.constant 0 : i32
    return %c0_i32, %c0_i32_0 : i32, i32
  }
  func.func @transform_3(%arg0: i32, %arg1: i32) -> (i32, i32, i32) {
    %c0_i32 = arith.constant 0 : i32
    %c0_i32_0 = arith.constant 0 : i32
    %c0_i32_1 = arith.constant 0 : i32
    return %arg0, %c0_i32, %c0_i32_0 : i32, i32, i32
  }
}

</mosaic_0001>

<llo_original>
// kernel: tpu_custom_call.1
$region0: #{tpu_custom_call.1}
  #allocation0 [shape = 'u32[]', space=smem, size = 0x4, offset = 0x4, fixed_abs, tag = 'smem constant byte address 0x4 - core index']
  #allocation1 [shape = 'u32[72,128]{1,0:T(1,128)}', space=vmem, size = 0x9000, scoped, tag = 'internal scratch']
  #allocation2 [shape = 'f32[1,1]{1,0:T(1,128)}', space=vmem, size = 0x200, scoped, tag = 'scratch operand']
  %s0 = inlined_call_operand.vmem [shape: f32[8,32], index: 0, kind: input, shape index: {}]
  %s1 = inlined_call_operand.vmem [shape: s32[8,1], index: 1, kind: input, shape index: {}]
  %s2 = inlined_call_operand.vmem [shape: f32[1,32], index: 2, kind: input, shape index: {}]
  %s3 = inlined_call_operand.hbm [shape: f32[1,1,1], index: 3, kind: output, shape index: {}]
  %s4 = sld [smem:[#allocation0]]
  $region30: #{tpu_custom_call.1} parent=0
    _
  %s6 = ssub.s32 1, %s4
  %s7 = scalar_select 0, %s6, %s4
  $region1: #{tpu_custom_call.1} parent=0
    #allocation3 [shape = 'u8[512]{0}', space=vmem, size = 0x400, scoped, tag = 'output window, operand 0, single buffered']
    #allocation4 [shape = 's32[1]{0}', space=sflag, size = 0x4, scoped, tag = 'scoped memory for tpu_custom_call.1']
    %8 = vsyncpa [#allocation4], 0
    // Predicated region
    $region2: #{tpu_custom_call.1} parent=1 // pred_check
      _
    $region3: #{tpu_custom_call.1} parent=1 // pred_check_branch
      %10 = sbr.rel (0) target = $region5
    $region4: #{tpu_custom_call.1} parent=1 // pred_region
      %s11 = sadd.s32 0, 0
      %p12 = scmp.lt.s32.totalorder %s11, 0
      %s13 = scalar_select %p12, %s11, 0
      %s14 = smul.addr %s13, 8
      %s15 = scalar_lea.vmem %s0, %s14
      %s16 = sadd.s32 0, 0
    $region5: #{tpu_custom_call.1} parent=1 // pred_fallthru
      _
    // Predicated region
    $region6: #{tpu_custom_call.1} parent=1 // pred_check
      _
    $region7: #{tpu_custom_call.1} parent=1 // pred_check_branch
      %18 = sbr.rel (0) target = $region9
    $region8: #{tpu_custom_call.1} parent=1 // pred_region
      %s19 = sadd.s32 0, 0
      %p20 = scmp.lt.s32.totalorder %s19, 0
      %s21 = scalar_select %p20, %s19, 0
      %s22 = smul.addr %s21, 8
      %s23 = scalar_lea.vmem %s1, %s22
      %s24 = sadd.s32 0, 0
    $region9: #{tpu_custom_call.1} parent=1 // pred_fallthru
      _
    // Predicated region
    $region10: #{tpu_custom_call.1} parent=1 // pred_check
      _
    $region11: #{tpu_custom_call.1} parent=1 // pred_check_branch
      %26 = sbr.rel (0) target = $region13
    $region12: #{tpu_custom_call.1} parent=1 // pred_region
      _
    $region13: #{tpu_custom_call.1} parent=1 // pred_fallthru
      _
    %s27 = sadd.s32 0, 0
    %p28 = scmp.lt.s32.totalorder %s27, 0
    %s29 = scalar_select %p28, %s27, 0
    %s30 = smul.addr %s29, 8
    %s31 = scalar_lea.vmem %s0, %s30
    %s32 = sadd.s32 0, 0
    %p33 = scmp.lt.s32.totalorder %s32, 0
    %s34 = scalar_select %p33, %s32, 0
    %s35 = smul.addr %s34, 8
    %s36 = scalar_lea.vmem %s1, %s35
    %s37 = sadd.s32 0, 0
    %p38 = scmp.lt.s32.totalorder %s37, 0
    %s39 = scalar_select %p38, %s37, 0
    %s40 = smul.addr %s39, 8
    %s41 = scalar_lea.vmem %s0, %s40
    %s42 = sadd.s32 0, 0
    %s43 = sadd.s32 0, 0
    %p44 = scmp.lt.s32.totalorder %s43, 0
    %s45 = scalar_select %p44, %s43, 0
    %s46 = smul.addr %s45, 8
    %s47 = scalar_lea.vmem %s1, %s46
    %s48 = sadd.s32 0, 0
    %p49 = scmp.eq.s32.totalorder 0, 0
    // Predicated region
    $region14: #{tpu_custom_call.1} parent=1 // pred_check
      %p50 = pneg %p49
    $region15: #{tpu_custom_call.1} parent=1 // pred_check_branch
      %52 = sbr.rel (%p50) target = $region17
    $region16: #{tpu_custom_call.1} parent=1 // pred_region
      %vm53 = vcmask 0
      %54 = vst.msk [vmem:[#allocation2] sm:$0x1] %vm53, 0.0
    $region17: #{tpu_custom_call.1} parent=1 // pred_fallthru
      _
    %v55 = vld [vmem:[%s41] sm:$0xff]
    %v56 = vld [vmem:[%s47] sm:$0xff]
    %v57 = vld [vmem:[%s2] sm:$0x1]
    %vm58 = vcmask 261120
    %v59 = vsel %vm58, %v55, -inf
    %60 = vmax.xlane.f32.xlu0 %v59
    %v61 = vpop.xlane.xlu0 %60
    %v62 = vsub.f32 %v55, %v61
    %v63 = vmul.f32 %v62, 1.442695
    %v64 = vpow.pop %v63
    %v65 = vsel %vm58, %v64, 0.0
    %66 = vadd.xlane.f32.xlu0 %v65
    %v67 = vpop.xlane.xlu0 %66
    %v68 = vlog2.pop %v67
    %v69 = vmul.f32 %v68, 0.6931472
    %v70 = vlaneseq
    %v71 = vand.u32 %v70, 127
    %72 = vset.pattern.permute.xlu0 0
    %73 = vperm.xlu0 %72, %v56
    %v74 = vpop.permute.xlu0 %73
    %vm75 = vcmp.eq.s32.totalorder %v71, %v74
    %v76 = vsel %vm75, 1, 0
    %v77 = vcvt.s32.f32 %v76
    %v78 = vmul.f32 %v62, %v77
    %v79 = vsel %vm58, %v78, 0.0
    %80 = vadd.xlane.f32.xlu0 %v79
    %v81 = vpop.xlane.xlu0 %80
    %v83 = vperm.slane %v57, 0
    %v85 = vmul.f32 %v83, %v77
    %v86 = vsel %vm58, %v85, 0.0
    %87 = vadd.xlane.f32.xlu0 %v86
    %v88 = vpop.xlane.xlu0 %87
    %v89 = vsub.f32 %v81, %v69
    %v90 = vmul.f32 %v89, 1.442695
    %v91 = vpow.pop %v90
    %v92 = vsub.f32 1.0, %v91
    %v93 = vmul.f32 %v92, %v92
    %v94 = vsub.f32 0.0, %v88
    %v95 = vmul.f32 %v94, %v93
    %v96 = vmul.f32 %v95, %v89
    %s97 = sadd.s32 0, 0
    %s98 = smul.u32 %s97, 8
    %v99 = vlaneseq
    %v100 = vshrl.u32 %v99, 7
    %v101 = vstv %s98
    %v102 = vadd.s32 %v101, %v100
    %vm103 = vcmp.lt.s32.totalorder %v102, 8
    %v104 = vsel %vm103, %v96, 0.0
    %v105 = vld [vmem:[#allocation2] sm:$0x1]
    %v106 = vrot.slane %v104, 4
    %v107 = vadd.f32 %v104, %v106
    %v108 = vrot.slane %v107, 2
    %v109 = vadd.f32 %v107, %v108
    %v110 = vrot.slane %v109, 1
    %v111 = vadd.f32 %v109, %v110
    %v112 = vadd.f32 %v105, %v111
    %vm113 = vcmask 0
    %114 = vst.msk [vmem:[#allocation2] sm:$0x1] %vm113, %v112
    // Predicated region
    $region18: #{tpu_custom_call.1} parent=1 // pred_check
      %p115 = pneg %p49
    $region19: #{tpu_custom_call.1} parent=1 // pred_check_branch
      %117 = sbr.rel (%p115) target = $region21
    $region20: #{tpu_custom_call.1} parent=1 // pred_region
      %v118 = vld [vmem:[#allocation2] sm:$0x1]
      %119 = vst.msk [vmem:[#allocation3] sm:$0x1] %vm113, %v118
    $region21: #{tpu_custom_call.1} parent=1 // pred_fallthru
      _
    // Predicated region
    $region22: #{tpu_custom_call.1} parent=1 // pred_check
      _
    $region23: #{tpu_custom_call.1} parent=1 // pred_check_branch
      %121 = sbr.rel (0) target = $region25
    $region24: #{tpu_custom_call.1} parent=1 // pred_region
      %123 = vsyncadd [#allocation4], 0
      %s125 = sshll.u32 [#allocation3], 4
      %s126 = int_to_ptr.vmem [resolvable:$true] %s125
      %s127 = sshll.u32 %s3, 4
      %s128 = int_to_ptr.hbm [resolvable:$true] %s127
      %130 = dma.vmem_to_hbm [thread:$0]  %s126, 16, %s128, [#allocation4]
    $region25: #{tpu_custom_call.1} parent=1 // pred_fallthru
      _
    // Predicated region
    $region26: #{tpu_custom_call.1} parent=1 // pred_check
      _
    $region27: #{tpu_custom_call.1} parent=1 // pred_check_branch
      %132 = sbr.rel (0) target = $region29
    $region28: #{tpu_custom_call.1} parent=1 // pred_region
      %134 = dma.done [#allocation4], 16
    $region29: #{tpu_custom_call.1} parent=1 // pred_fallthru
      _
    %135 = vsyncpa [#allocation4], 1

</llo_original>
